<compile_context>
chip_gen: v7x
topology: tpu7x:2x2x1
jax: 0.10.0
libtpu: 0.0.40
codegen_flags: <defaults>
</compile_context>

<pallas_src>
import math

import jax
import jax.numpy as jnp
from jax.experimental import pallas as pl
from jax.experimental.pallas import tpu as pltpu

LANE = 128
VMEM_LIMIT = 32 * 1024 * 1024
# Budget for keeping the (double-buffered) bf16 feature matrix VMEM-resident.
RESIDENT_FEATURE_BYTES = 16 * 1024 * 1024


def _round_up(v, m):
    return ((v + m - 1) // m) * m


def _pick_tile(n_pad, target):
    """Largest multiple of 128 that divides n_pad and is <= target."""
    t = max(LANE, min(target, n_pad))
    t = (t // LANE) * LANE
    while n_pad % t != 0:
        t -= LANE
    return t


# ----------------------------------------------------------------------------
# Pallas kernels
#   grid = (row tiles [parallel], K tiles [arbitrary, reduction last])
#   A is streamed in (tm, tk) bf16 tiles; features are either VMEM-resident
#   (constant block index, sliced with pl.ds) or streamed as (tk, P) slabs.
# ----------------------------------------------------------------------------
def _make_layer1_kernel(tk, resident_features):
    """acc = A @ F; finalize: hw2 = relu(acc + b1) @ W2  (projection fused)."""

    def kernel(a_ref, f_ref, b1_ref, w2_ref, o_ref, acc_ref):
        k = pl.program_id(1)

        @pl.when(k == 0)
        def _():
            acc_ref[...] = jnp.zeros_like(acc_ref)

        if resident_features:
            start = pl.multiple_of(k * tk, tk)
            f = f_ref[pl.ds(start, tk), :]
        else:
            f = f_ref[...]
        # bf16 x bf16 -> f32 accumulation on the MXU.
        acc_ref[...] += jnp.dot(a_ref[...], f, preferred_element_type=jnp.float32)

        @pl.when(k == pl.num_programs(1) - 1)
        def _():
            h = jnp.maximum(acc_ref[...] + b1_ref[...], 0.0)
            # Fused layer-2 projection: tiny (P x Pc) dot rides in MXU slack;
            # padded W2 rows are zero so padded h columns contribute nothing.
            hw2 = jnp.dot(h.astype(jnp.bfloat16), w2_ref[...],
                          preferred_element_type=jnp.float32)
            o_ref[...] = hw2.astype(o_ref.dtype)

    return kernel


def _make_layer2_kernel(tk, resident_features, num_classes):
    """acc = A @ F; finalize: log_softmax(acc + b2) over the valid columns."""

    def kernel(a_ref, f_ref, b2_ref, o_ref, acc_ref):
        k = pl.program_id(1)

        @pl.when(k == 0)
        def _():
            acc_ref[...] = jnp.zeros_like(acc_ref)

        if resident_features:
            start = pl.multiple_of(k * tk, tk)
            f = f_ref[pl.ds(start, tk), :]
        else:
            f = f_ref[...]
        acc_ref[...] += jnp.dot(a_ref[...], f, preferred_element_type=jnp.float32)

        @pl.when(k == pl.num_programs(1) - 1)
        def _():
            z = acc_ref[...] + b2_ref[...]
            # Mask padded logit columns so they don't corrupt the normalizer.
            col = jax.lax.broadcasted_iota(jnp.int32, z.shape, 1)
            z = jnp.where(col < num_classes, z, -jnp.inf)
            m = jnp.max(z, axis=1, keepdims=True)
            s = z - m
            lse = jnp.log(jnp.sum(jnp.exp(s), axis=1, keepdims=True))
            o_ref[...] = (s - lse).astype(o_ref.dtype)

    return kernel


def _feature_spec(n_pad, p, tk, resident):
    if resident:
        # Full-array block with a constant index: DMA'd once, sliced in-kernel.
        return pl.BlockSpec((n_pad, p), lambda i, k: (0, 0))
    return pl.BlockSpec((tk, p), lambda i, k: (k, 0))


def _layer1(a_pad, xw1_pad, b1_pad, w2_pad, *, tm, tk, resident):
    n_pad = a_pad.shape[0]
    p = xw1_pad.shape[1]
    pc = w2_pad.shape[1]
    grid = (n_pad // tm, n_pad // tk)
    return pl.pallas_call(
        _make_layer1_kernel(tk, resident),
        out_shape=jax.ShapeDtypeStruct((n_pad, pc), jnp.bfloat16),
        grid=grid,
        in_specs=[
            pl.BlockSpec((tm, tk), lambda i, k: (i, k)),   # A tile (streamed)
            _feature_spec(n_pad, p, tk, resident),         # X @ W1 (padded)
            pl.BlockSpec((1, p), lambda i, k: (0, 0)),     # b1 (resident)
            pl.BlockSpec((p, pc), lambda i, k: (0, 0)),    # W2 (resident)
        ],
        out_specs=pl.BlockSpec((tm, pc), lambda i, k: (i, 0)),
        scratch_shapes=[pltpu.VMEM((tm, p), jnp.float32)],
        compiler_params=pltpu.CompilerParams(
            dimension_semantics=("parallel", "arbitrary"),
            vmem_limit_bytes=VMEM_LIMIT,
        ),
    )(a_pad, xw1_pad, b1_pad, w2_pad)


def _layer2(a_pad, hw2_pad, b2_pad, *, num_classes, tm, tk, resident):
    n_pad = a_pad.shape[0]
    pc = hw2_pad.shape[1]
    grid = (n_pad // tm, n_pad // tk)
    return pl.pallas_call(
        _make_layer2_kernel(tk, resident, num_classes),
        out_shape=jax.ShapeDtypeStruct((n_pad, pc), jnp.float32),
        grid=grid,
        in_specs=[
            pl.BlockSpec((tm, tk), lambda i, k: (i, k)),   # A tile (streamed)
            _feature_spec(n_pad, pc, tk, resident),        # h @ W2 from layer 1
            pl.BlockSpec((1, pc), lambda i, k: (0, 0)),    # b2 (resident)
        ],
        out_specs=pl.BlockSpec((tm, pc), lambda i, k: (i, 0)),
        scratch_shapes=[pltpu.VMEM((tm, pc), jnp.float32)],
        compiler_params=pltpu.CompilerParams(
            dimension_semantics=("parallel", "arbitrary"),
            vmem_limit_bytes=VMEM_LIMIT,
        ),
    )(a_pad, hw2_pad, b2_pad)


# ----------------------------------------------------------------------------
# gcn_norm -> dense normalized adjacency, built directly padded & in bf16.
# TODO(synk): at real Reddit scale (N~233k) the dense [N,N] A_hat must be
# replaced by a CSR / block-sparse PrefetchScalarGridSpec gather that skips
# empty neighbor blocks; dense streaming is O(N^2) bytes.
# ----------------------------------------------------------------------------
def build_normalized_adjacency(edge_index, num_nodes, *, padded_size=None,
                               dtype=jnp.float32):
    if padded_size is None:
        padded_size = num_nodes
    row, col = edge_index[0], edge_index[1]
    ew = jnp.ones((row.shape[0],), dtype=jnp.float32)

    # add self loops with fill_value = 1.0 (improved=False)
    loop = jnp.arange(num_nodes, dtype=row.dtype)
    row = jnp.concatenate([row, loop])
    col = jnp.concatenate([col, loop])
    ew = jnp.concatenate([ew, jnp.ones((num_nodes,), dtype=jnp.float32)])

    # deg = scatter_add(edge_weight, col); normalization in f32
    deg = jnp.zeros((num_nodes,), dtype=jnp.float32).at[col].add(ew)
    deg_inv_sqrt = deg ** -0.5
    deg_inv_sqrt = jnp.where(jnp.isinf(deg_inv_sqrt), 0.0, deg_inv_sqrt)
    w_norm = deg_inv_sqrt[row] * ew * deg_inv_sqrt[col]

    # propagate aggregates x_j (j = source = row) at target = col:
    # out[col] += w * x[row]  <=>  out = A_hat @ x with A_hat[col, row] = w
    # Scatter straight into the padded target-dtype buffer (no f32 O(N^2) pass).
    a_hat = jnp.zeros((padded_size, padded_size), dtype=dtype)
    a_hat = a_hat.at[col, row].add(w_norm.astype(dtype))
    return a_hat


# ----------------------------------------------------------------------------
# Full forward pass
# ----------------------------------------------------------------------------
def gcn_forward(x, edge_index, w1, b1, w2, b2, *, tm_target=512, tk_target=2048):
    N = x.shape[0]
    H = w1.shape[1]
    C = w2.shape[1]
    assert H <= LANE and C <= LANE

    n_pad = _round_up(N, LANE)
    tm = _pick_tile(n_pad, tm_target)
    tk = _pick_tile(n_pad, tk_target)

    ph = _round_up(max(H, LANE), LANE)   # lane-padded hidden width
    pc = _round_up(max(C, LANE), LANE)   # lane-padded class width

    # Normalized adjacency, bf16, built directly at padded size.
    a_pad = build_normalized_adjacency(edge_index, N, padded_size=n_pad,
                                       dtype=jnp.bfloat16)

    # Layer-1 projection once in the wrapper (tiny dense matmul).
    xw1 = jnp.dot(x, w1, preferred_element_type=jnp.float32)
    xw1_pad = jnp.zeros((n_pad, ph), jnp.bfloat16).at[:N, :H].set(
        xw1.astype(jnp.bfloat16))
    b1_pad = jnp.zeros((1, ph), jnp.float32).at[:, :H].set(
        jnp.asarray(b1, jnp.float32).reshape(1, -1))
    w2_pad = jnp.zeros((ph, pc), jnp.bfloat16).at[:H, :C].set(
        jnp.asarray(w2, jnp.bfloat16))
    b2_pad = jnp.zeros((1, pc), jnp.float32).at[:, :C].set(
        jnp.asarray(b2, jnp.float32).reshape(1, -1))

    # Keep the bf16 feature matrix fully VMEM-resident when it fits.
    resident = (2 * n_pad * max(ph, pc) * 2) <= RESIDENT_FEATURE_BYTES

    # ---- layer 1: aggregation + bias + relu, fused with the h @ W2 projection
    hw2_pad = _layer1(a_pad, xw1_pad, b1_pad, w2_pad, tm=tm, tk=tk,
                      resident=resident)
    # TODO(synk): F.dropout(x, training=self.training) is identity in eval
    # mode; training-time Bernoulli masking is omitted here.

    # ---- layer 2: aggregation + bias + masked log_softmax ----
    out_pad = _layer2(a_pad, hw2_pad, b2_pad, num_classes=C, tm=tm, tk=tk,
                      resident=resident)
    return out_pad[:N, :C]


def glorot(key, shape, dtype=jnp.float32):
    fan_in, fan_out = shape
    a = math.sqrt(6.0 / (fan_in + fan_out))
    return jax.random.uniform(key, shape, dtype=dtype, minval=-a, maxval=a)


def reference_forward(a_hat, x, w1, b1, w2, b2):
    """Plain f32 JAX reference (no bf16 casts) for a loose correctness check."""
    h = jnp.maximum(a_hat @ (x @ w1) + b1, 0.0)
    z = a_hat @ (h @ w2) + b2
    return jax.nn.log_softmax(z, axis=1)


if __name__ == "__main__":
    # Small synthetic shapes (Reddit is 602 features / 41 classes; scaled down)
    N = 256         # nodes
    F_IN = 64       # node features
    HIDDEN = 16     # conv1 output channels (as in the module)
    C = 8           # num classes
    E = 1024        # edges (no self loops by construction)

    key = jax.random.PRNGKey(0)
    k_x, k_row, k_off, k_w1, k_w2 = jax.random.split(key, 5)

    # node features
    x = jax.random.normal(k_x, (N, F_IN), dtype=jnp.float32)

    # random edge_index [2, E] without self loops
    row = jax.random.randint(k_row, (E,), 0, N, dtype=jnp.int32)
    off = jax.random.randint(k_off, (E,), 1, N, dtype=jnp.int32)
    col = (row + off) % N
    edge_index = jnp.stack([row, col], axis=0)

    # deterministic parameters (glorot weights, zero biases), matching Myconv
    w1 = glorot(k_w1, (F_IN, HIDDEN))
    b1 = jnp.zeros((1, HIDDEN), dtype=jnp.float32)
    w2 = glorot(k_w2, (HIDDEN, C))
    b2 = jnp.zeros((1, C), dtype=jnp.float32)

    out = gcn_forward(x, edge_index, w1, b1, w2, b2)
    out = jax.block_until_ready(out)

    assert out.shape == (N, C)
    assert bool(jnp.all(jnp.isfinite(out)))
    # rows of log_softmax must exp-sum to ~1
    assert bool(jnp.allclose(jnp.sum(jnp.exp(out), axis=1), 1.0, atol=1e-4))
    # loose agreement with the full-f32 reference (bf16 A / features in kernel)
    a_hat_f32 = build_normalized_adjacency(edge_index, N, dtype=jnp.float32)
    ref = reference_forward(a_hat_f32, x, w1, b1, w2, b2)
    assert bool(jnp.max(jnp.abs(out - ref)) < 0.1)

    print("KERNEL_OK")
</pallas_src>

<mosaic_0001>
module attributes {stable_mosaic.version = 11 : i64} {
  func.func @kernel(%arg0: i32, %arg1: i32, %arg2: memref<256x256xbf16, #tpu.memory_space<vmem>>, %arg3: memref<256x128xbf16, #tpu.memory_space<vmem>>, %arg4: memref<1x128xf32, #tpu.memory_space<vmem>>, %arg5: memref<128x128xbf16, #tpu.memory_space<vmem>>, %arg6: memref<256x128xbf16, #tpu.memory_space<vmem>>, %arg7: memref<256x128xf32, #tpu.memory_space<vmem>>) attributes {dimension_semantics = [#tpu.dimension_semantics<parallel>, #tpu.dimension_semantics<arbitrary>], iteration_bounds = array<i64: 1, 1>, scalar_prefetch = 0 : i64, scratch_operands = 1 : i64, tpu.core_type = #tpu.core_type<tc>, window_params = [{transform_indices = @transform_0, window_bounds = array<i64: 256, 256>}, {pipeline_mode = #tpu.pipeline_mode<synchronous>, transform_indices = @transform_1, window_bounds = array<i64: 256, 128>}, {pipeline_mode = #tpu.pipeline_mode<synchronous>, transform_indices = @transform_2, window_bounds = array<i64: 1, 128>}, {pipeline_mode = #tpu.pipeline_mode<synchronous>, transform_indices = @transform_3, window_bounds = array<i64: 128, 128>}, {transform_indices = @transform_4, window_bounds = array<i64: 256, 128>}]} {
    %c0_i32 = arith.constant 0 : i32
    %0 = arith.cmpi eq, %arg1, %c0_i32 : i32
    %1 = arith.extui %0 : i1 to i32
    %c0_i32_0 = arith.constant 0 : i32
    %2 = arith.cmpi ne, %1, %c0_i32_0 : i32
    scf.if %2 {
      %cst_9 = arith.constant 0.000000e+00 : f32
      %15 = vector.broadcast %cst_9 : f32 to vector<256x128xf32>
      %c0_10 = arith.constant 0 : index
      %c0_11 = arith.constant 0 : index
      %16 = vector.load %arg7[%c0_10, %c0_11] : memref<256x128xf32, #tpu.memory_space<vmem>>, vector<256x128xf32>
      tpu.vector_store %arg7[%c0_10, %c0_11], %15 {strides = array<i32>} : memref<256x128xf32, #tpu.memory_space<vmem>>, vector<256x128xf32>,
    } else {
    }
    %c256_i32 = arith.constant 256 : i32
    %3 = arith.muli %arg1, %c256_i32 : i32
    %4 = tpu.assume_multiple %3, 256 : i32
    %5 = arith.index_cast %4 : i32 to index
    %c0 = arith.constant 0 : index
    %6 = vector.load %arg3[%5, %c0] : memref<256x128xbf16, #tpu.memory_space<vmem>>, vector<256x128xbf16>
    %c0_1 = arith.constant 0 : index
    %c0_2 = arith.constant 0 : index
    %7 = vector.load %arg7[%c0_1, %c0_2] : memref<256x128xf32, #tpu.memory_space<vmem>>, vector<256x128xf32>
    %c0_3 = arith.constant 0 : index
    %c0_4 = arith.constant 0 : index
    %8 = vector.load %arg2[%c0_3, %c0_4] : memref<256x256xbf16, #tpu.memory_space<vmem>>, vector<256x256xbf16>
    %cst = arith.constant dense<0.000000e+00> : vector<256x128xf32>
    %9 = tpu.matmul %8, %6, %cst {dimension_numbers = #tpu.dot_dimension_numbers<[1], [0], [0], [1], [0, 0, 1, 1], [], []>} : vector<256x256xbf16>, vector<256x128xbf16>, vector<256x128xf32> -> vector<256x128xf32>
    %10 = arith.addf %7, %9 : vector<256x128xf32>
    %c0_5 = arith.constant 0 : index
    %c0_6 = arith.constant 0 : index
    %11 = vector.load %arg7[%c0_5, %c0_6] : memref<256x128xf32, #tpu.memory_space<vmem>>, vector<256x128xf32>
    tpu.vector_store %arg7[%c0_5, %c0_6], %10 {strides = array<i32>} : memref<256x128xf32, #tpu.memory_space<vmem>>, vector<256x128xf32>,
    %c0_i32_7 = arith.constant 0 : i32
    %12 = arith.cmpi eq, %arg1, %c0_i32_7 : i32
    %13 = arith.extui %12 : i1 to i32
    %c0_i32_8 = arith.constant 0 : i32
    %14 = arith.cmpi ne, %13, %c0_i32_8 : i32
    scf.if %14 {
      %c0_9 = arith.constant 0 : index
      %c0_10 = arith.constant 0 : index
      %15 = vector.load %arg7[%c0_9, %c0_10] : memref<256x128xf32, #tpu.memory_space<vmem>>, vector<256x128xf32>
      %c0_11 = arith.constant 0 : index
      %c0_12 = arith.constant 0 : index
      %16 = vector.load %arg4[%c0_11, %c0_12] : memref<1x128xf32, #tpu.memory_space<vmem>>, vector<1x128xf32>
      %17 = vector.broadcast %16 : vector<1x128xf32> to vector<256x128xf32>
      %18 = arith.addf %15, %17 : vector<256x128xf32>
      %cst_13 = arith.constant 0.000000e+00 : f32
      %19 = vector.broadcast %cst_13 : f32 to vector<256x128xf32>
      %20 = arith.maximumf %18, %19 : vector<256x128xf32>
      %21 = arith.truncf %20 : vector<256x128xf32> to vector<256x128xbf16>
      %c0_14 = arith.constant 0 : index
      %c0_15 = arith.constant 0 : index
      %22 = vector.load %arg5[%c0_14, %c0_15] : memref<128x128xbf16, #tpu.memory_space<vmem>>, vector<128x128xbf16>
      %cst_16 = arith.constant dense<0.000000e+00> : vector<256x128xf32>
      %23 = tpu.matmul %21, %22, %cst_16 {dimension_numbers = #tpu.dot_dimension_numbers<[1], [0], [0], [1], [0, 0, 1, 1], [], []>} : vector<256x128xbf16>, vector<128x128xbf16>, vector<256x128xf32> -> vector<256x128xf32>
      %24 = arith.truncf %23 : vector<256x128xf32> to vector<256x128xbf16>
      %c0_17 = arith.constant 0 : index
      %c0_18 = arith.constant 0 : index
      %25 = vector.load %arg6[%c0_17, %c0_18] : memref<256x128xbf16, #tpu.memory_space<vmem>>, vector<256x128xbf16>
      tpu.vector_store %arg6[%c0_17, %c0_18], %24 {strides = array<i32>} : memref<256x128xbf16, #tpu.memory_space<vmem>>, vector<256x128xbf16>,
    } else {
    }
    return
  }
  func.func @transform_0(%arg0: i32, %arg1: i32) -> (i32, i32) {
    %c0_i32 = arith.constant 0 : i32
    return %arg0, %arg1 : i32, i32
  }
  func.func @transform_1(%arg0: i32, %arg1: i32) -> (i32, i32) {
    %c0_i32 = arith.constant 0 : i32
    %c0_i32_0 = arith.constant 0 : i32
    %c0_i32_1 = arith.constant 0 : i32
    return %c0_i32, %c0_i32_0 : i32, i32
  }
  func.func @transform_2(%arg0: i32, %arg1: i32) -> (i32, i32) {
    %c0_i32 = arith.constant 0 : i32
    %c0_i32_0 = arith.constant 0 : i32
    %c0_i32_1 = arith.constant 0 : i32
    return %c0_i32, %c0_i32_0 : i32, i32
  }
  func.func @transform_3(%arg0: i32, %arg1: i32) -> (i32, i32) {
    %c0_i32 = arith.constant 0 : i32
    %c0_i32_0 = arith.constant 0 : i32
    %c0_i32_1 = arith.constant 0 : i32
    return %c0_i32, %c0_i32_0 : i32, i32
  }
  func.func @transform_4(%arg0: i32, %arg1: i32) -> (i32, i32) {
    %c0_i32 = arith.constant 0 : i32
    %c0_i32_0 = arith.constant 0 : i32
    return %arg0, %c0_i32 : i32, i32
  }
}

</mosaic_0001>

<llo_original>
// kernel: tpu_custom_call.1
$region0: #{tpu_custom_call.1}
  #allocation0 [shape = 'u32[]', space=smem, size = 0x4, offset = 0x4, fixed_abs, tag = 'smem constant byte address 0x4 - core index']
  #allocation1 [shape = 'u32[144,128]{1,0:T(1,128)}', space=vmem, size = 0x12000, scoped, tag = 'internal scratch']
  #allocation2 [shape = 'f32[256,128]{1,0:T(8,128)}', space=vmem, size = 0x20000, scoped, tag = 'scratch operand']
  %s0 = inlined_call_operand.hbm [shape: bf16[256,256], index: 0, kind: input, shape index: {}]
  %s1 = inlined_call_operand.hbm [shape: bf16[256,128], index: 1, kind: input, shape index: {}]
  %s2 = inlined_call_operand.vmem [shape: f32[1,128], index: 2, kind: input, shape index: {}]
  %s3 = inlined_call_operand.hbm [shape: bf16[128,128], index: 3, kind: input, shape index: {}]
  %s4 = inlined_call_operand.hbm [shape: bf16[256,128], index: 4, kind: output, shape index: {}]
  %s5 = sld [smem:[#allocation0]]
  $region46: #{tpu_custom_call.1} parent=0
    _
  %s7 = ssub.s32 1, %s5
  %s8 = scalar_select 0, %s7, %s5
  $region1: #{tpu_custom_call.1} parent=0
    #allocation3 [shape = 'u8[131072]{0}', space=vmem, size = 0x20000, scoped, tag = 'input window, operand 0, single buffered']
    #allocation4 [shape = 's32[1]{0}', space=sflag, size = 0x4, scoped, tag = 'scoped memory for tpu_custom_call.1']
    #allocation5 [shape = 's32[1]{0}', space=sflag, size = 0x4, scoped, tag = 'scoped memory for tpu_custom_call.1']
    #allocation6 [shape = 'u8[65536]{0}', space=vmem, size = 0x10000, scoped, tag = 'input window, operand 1, single buffered']
    #allocation7 [shape = 's32[1]{0}', space=sflag, size = 0x4, scoped, tag = 'scoped memory for tpu_custom_call.1']
    #allocation8 [shape = 'u8[32768]{0}', space=vmem, size = 0x8000, scoped, tag = 'input window, operand 3, single buffered']
    #allocation9 [shape = 'u8[65536]{0}', space=vmem, size = 0x10000, scoped, tag = 'output window, operand 0, single buffered']
    %9 = vsyncpa [#allocation4], 0
    %10 = vsyncpa [#allocation7], 0
    %11 = vsyncpa [#allocation5], 0
    // Predicated region
    $region2: #{tpu_custom_call.1} parent=1 // pred_check
      _
    $region3: #{tpu_custom_call.1} parent=1 // pred_check_branch
      %13 = sbr.rel (0) target = $region5
    $region4: #{tpu_custom_call.1} parent=1 // pred_region
      %s15 = ssub.s32 4096, 4096
      %16 = vsyncadd [#allocation4], %s15
      %s17 = sshll.u32 [#allocation3], 4
      %s18 = int_to_ptr.vmem [resolvable:$true] %s17
      %23 = dma.hbm_to_vmem [thread:$0]  %s0, 4096, %s18, [#allocation4], 128, 128, 8
    $region5: #{tpu_custom_call.1} parent=1 // pred_fallthru
      _
    // Predicated region
    $region6: #{tpu_custom_call.1} parent=1 // pred_check
      _
    $region7: #{tpu_custom_call.1} parent=1 // pred_check_branch
      %25 = sbr.rel (0) target = $region9
    $region8: #{tpu_custom_call.1} parent=1 // pred_region
      %s27 = ssub.s32 2048, 2048
      %28 = vsyncadd [#allocation7], %s27
      %s29 = sshll.u32 [#allocation6], 4
      %s30 = int_to_ptr.vmem [resolvable:$true] %s29
      %35 = dma.hbm_to_vmem [thread:$0]  %s1, 2048, %s30, [#allocation7], 64, 64, 4
    $region9: #{tpu_custom_call.1} parent=1 // pred_fallthru
      _
    // Predicated region
    $region10: #{tpu_custom_call.1} parent=1 // pred_check
      _
    $region11: #{tpu_custom_call.1} parent=1 // pred_check_branch
      %37 = sbr.rel (0) target = $region13
    $region12: #{tpu_custom_call.1} parent=1 // pred_region
      _
    $region13: #{tpu_custom_call.1} parent=1 // pred_fallthru
      _
    // Predicated region
    $region14: #{tpu_custom_call.1} parent=1 // pred_check
      _
    $region15: #{tpu_custom_call.1} parent=1 // pred_check_branch
      %39 = sbr.rel (0) target = $region17
    $region16: #{tpu_custom_call.1} parent=1 // pred_region
      %s41 = ssub.s32 1024, 1024
      %42 = vsyncadd [#allocation7], %s41
      %s43 = sshll.u32 [#allocation8], 4
      %s44 = int_to_ptr.vmem [resolvable:$true] %s43
      %49 = dma.hbm_to_vmem [thread:$0]  %s3, 1024, %s44, [#allocation7], 64, 64, 4
    $region17: #{tpu_custom_call.1} parent=1 // pred_fallthru
      _
    // Predicated region
    $region18: #{tpu_custom_call.1} parent=1 // pred_check
      _
    $region19: #{tpu_custom_call.1} parent=1 // pred_check_branch
      %51 = sbr.rel (0) target = $region21
    $region20: #{tpu_custom_call.1} parent=1 // pred_region
      %52 = dma.done [#allocation4], 4096
    $region21: #{tpu_custom_call.1} parent=1 // pred_fallthru
      _
    // Predicated region
    $region22: #{tpu_custom_call.1} parent=1 // pred_check
      _
    $region23: #{tpu_custom_call.1} parent=1 // pred_check_branch
      %54 = sbr.rel (0) target = $region25
    $region24: #{tpu_custom_call.1} parent=1 // pred_region
      %55 = dma.done [#allocation7], 2048
    $region25: #{tpu_custom_call.1} parent=1 // pred_fallthru
      _
    // Predicated region
    $region26: #{tpu_custom_call.1} parent=1 // pred_check
      _
    $region27: #{tpu_custom_call.1} parent=1 // pred_check_branch
      %57 = sbr.rel (0) target = $region29
    $region28: #{tpu_custom_call.1} parent=1 // pred_region
      %58 = dma.done [#allocation7], 1024
    $region29: #{tpu_custom_call.1} parent=1 // pred_fallthru
      _
    %p60 = scmp.eq.s32.totalorder 0, 0
    // Predicated region
    $region30: #{tpu_custom_call.1} parent=1 // pred_check
      %p61 = pneg %p60
    $region31: #{tpu_custom_call.1} parent=1 // pred_check_branch
      %63 = sbr.rel (%p61) target = $region33
    $region32: #{tpu_custom_call.1} parent=1 // pred_region
      %64 = vst [vmem:[#allocation2] sm:$0xff] 0.0
      %65 = vst [vmem:[#allocation2 + $0x8] sm:$0xff] 0.0
      %66 = vst [vmem:[#allocation2 + $0x10] sm:$0xff] 0.0
      %67 = vst [vmem:[#allocation2 + $0x18] sm:$0xff] 0.0
      %68 = vst [vmem:[#allocation2 + $0x20] sm:$0xff] 0.0
      %69 = vst [vmem:[#allocation2 + $0x28] sm:$0xff] 0.0
      %70 = vst [vmem:[#allocation2 + $0x30] sm:$0xff] 0.0
      %71 = vst [vmem:[#allocation2 + $0x38] sm:$0xff] 0.0
      %72 = vst [vmem:[#allocation2 + $0x40] sm:$0xff] 0.0
      %73 = vst [vmem:[#allocation2 + $0x48] sm:$0xff] 0.0
      %74 = vst [vmem:[#allocation2 + $0x50] sm:$0xff] 0.0
      %75 = vst [vmem:[#allocation2 + $0x58] sm:$0xff] 0.0
      %76 = vst [vmem:[#allocation2 + $0x60] sm:$0xff] 0.0
      %77 = vst [vmem:[#allocation2 + $0x68] sm:$0xff] 0.0
      %78 = vst [vmem:[#allocation2 + $0x70] sm:$0xff] 0.0
      %79 = vst [vmem:[#allocation2 + $0x78] sm:$0xff] 0.0
      %80 = vst [vmem:[#allocation2 + $0x80] sm:$0xff] 0.0
      %81 = vst [vmem:[#allocation2 + $0x88] sm:$0xff] 0.0
      %82 = vst [vmem:[#allocation2 + $0x90] sm:$0xff] 0.0
      %83 = vst [vmem:[#allocation2 + $0x98] sm:$0xff] 0.0
      %84 = vst [vmem:[#allocation2 + $0xa0] sm:$0xff] 0.0
      %85 = vst [vmem:[#allocation2 + $0xa8] sm:$0xff] 0.0
      %86 = vst [vmem:[#allocation2 + $0xb0] sm:$0xff] 0.0
      %87 = vst [vmem:[#allocation2 + $0xb8] sm:$0xff] 0.0
      %88 = vst [vmem:[#allocation2 + $0xc0] sm:$0xff] 0.0
      %89 = vst [vmem:[#allocation2 + $0xc8] sm:$0xff] 0.0
      %90 = vst [vmem:[#allocation2 + $0xd0] sm:$0xff] 0.0
      %91 = vst [vmem:[#allocation2 + $0xd8] sm:$0xff] 0.0
      %92 = vst [vmem:[#allocation2 + $0xe0] sm:$0xff] 0.0
      %93 = vst [vmem:[#allocation2 + $0xe8] sm:$0xff] 0.0
      %94 = vst [vmem:[#allocation2 + $0xf0] sm:$0xff] 0.0
      %95 = vst [vmem:[#allocation2 + $0xf8] sm:$0xff] 0.0
    $region33: #{tpu_custom_call.1} parent=1 // pred_fallthru
      _
    %s96 = smul.u32 0, 256
    %s97 = sshra.s32 %s96, 3
    %s98 = sand.u32 %s96, 7
    %s99 = smul.addr %s97, 4
    %s100 = scalar_lea.vmem [#allocation6], %s99
    %v101 = vld [vmem:[%s100] sm:$0xf]
    %v102 = vld [vmem:[%s100 + $0x4] sm:$0xf]
    %v103 = vld [vmem:[%s100 + $0x8] sm:$0xf]
    %v104 = vld [vmem:[%s100 + $0xc] sm:$0xf]
    %v105 = vld [vmem:[%s100 + $0x10] sm:$0xf]
    %v106 = vld [vmem:[%s100 + $0x14] sm:$0xf]
    %v107 = vld [vmem:[%s100 + $0x18] sm:$0xf]
    %v108 = vld [vmem:[%s100 + $0x1c] sm:$0xf]
    %v109 = vld [vmem:[%s100 + $0x20] sm:$0xf]
    %v110 = vld [vmem:[%s100 + $0x24] sm:$0xf]
    %v111 = vld [vmem:[%s100 + $0x28] sm:$0xf]
    %v112 = vld [vmem:[%s100 + $0x2c] sm:$0xf]
    %v113 = vld [vmem:[%s100 + $0x30] sm:$0xf]
    %v114 = vld [vmem:[%s100 + $0x34] sm:$0xf]
    %v115 = vld [vmem:[%s100 + $0x38] sm:$0xf]
    %v116 = vld [vmem:[%s100 + $0x3c] sm:$0xf]
    %v117 = vld [vmem:[%s100 + $0x40] sm:$0xf]
    %v118 = vld [vmem:[%s100 + $0x44] sm:$0xf]
    %v119 = vld [vmem:[%s100 + $0x48] sm:$0xf]
    %v120 = vld [vmem:[%s100 + $0x4c] sm:$0xf]
    %v121 = vld [vmem:[%s100 + $0x50] sm:$0xf]
    %v122 = vld [vmem:[%s100 + $0x54] sm:$0xf]
    %v123 = vld [vmem:[%s100 + $0x58] sm:$0xf]
    %v124 = vld [vmem:[%s100 + $0x5c] sm:$0xf]
    %v125 = vld [vmem:[%s100 + $0x60] sm:$0xf]
    %v126 = vld [vmem:[%s100 + $0x64] sm:$0xf]
    %v127 = vld [vmem:[%s100 + $0x68] sm:$0xf]
    %v128 = vld [vmem:[%s100 + $0x6c] sm:$0xf]
    %v129 = vld [vmem:[%s100 + $0x70] sm:$0xf]
    %v130 = vld [vmem:[%s100 + $0x74] sm:$0xf]
    %v131 = vld [vmem:[%s100 + $0x78] sm:$0xf]
    %v132 = vld [vmem:[%s100 + $0x7c] sm:$0xf]
    %v133 = vld [vmem:[#allocation2] sm:$0xff]
    %v134 = vld [vmem:[#allocation2 + $0x8] sm:$0xff]
    %v135 = vld [vmem:[#allocation2 + $0x10] sm:$0xff]
    %v136 = vld [vmem:[#allocation2 + $0x18] sm:$0xff]
    %v137 = vld [vmem:[#allocation2 + $0x20] sm:$0xff]
    %v138 = vld [vmem:[#allocation2 + $0x28] sm:$0xff]
    %v139 = vld [vmem:[#allocation2 + $0x30] sm:$0xff]
    %v140 = vld [vmem:[#allocation2 + $0x38] sm:$0xff]
    %v141 = vld [vmem:[#allocation2 + $0x40] sm:$0xff]
    %v142 = vld [vmem:[#allocation2 + $0x48] sm:$0xff]
    %v143 = vld [vmem:[#allocation2 + $0x50] sm:$0xff]
    %v144 = vld [vmem:[#allocation2 + $0x58] sm:$0xff]
    %v145 = vld [vmem:[#allocation2 + $0x60] sm:$0xff]
    %v146 = vld [vmem:[#allocation2 + $0x68] sm:$0xff]
    %v147 = vld [vmem:[#allocation2 + $0x70] sm:$0xff]
    %v148 = vld [vmem:[#allocation2 + $0x78] sm:$0xff]
    %v149 = vld [vmem:[#allocation2 + $0x80] sm:$0xff]
    %v150 = vld [vmem:[#allocation2 + $0x88] sm:$0xff]
    %v151 = vld [vmem:[#allocation2 + $0x90] sm:$0xff]
    %v152 = vld [vmem:[#allocation2 + $0x98] sm:$0xff]
    %v153 = vld [vmem:[#allocation2 + $0xa0] sm:$0xff]
    %v154 = vld [vmem:[#allocation2 + $0xa8] sm:$0xff]
    %v155 = vld [vmem:[#allocation2 + $0xb0] sm:$0xff]
    %v156 = vld [vmem:[#allocation2 + $0xb8] sm:$0xff]
    %v157 = vld [vmem:[#allocation2 + $0xc0] sm:$0xff]
    %v158 = vld [vmem:[#allocation2 + $0xc8] sm:$0xff]
    %v159 = vld [vmem:[#allocation2 + $0xd0] sm:$0xff]
    %v160 = vld [vmem:[#allocation2 + $0xd8] sm:$0xff]
    %v161 = vld [vmem:[#allocation2 + $0xe0] sm:$0xff]
    %v162 = vld [vmem:[#allocation2 + $0xe8] sm:$0xff]
    %v163 = vld [vmem:[#allocation2 + $0xf0] sm:$0xff]
    %v164 = vld [vmem:[#allocation2 + $0xf8] sm:$0xff]
    %v165 = vld [vmem:[#allocation3] sm:$0xff]
    %v166 = vld [vmem:[#allocation3 + $0x8] sm:$0xff]
    %v167 = vld [vmem:[#allocation3 + $0x10] sm:$0xff]
    %v168 = vld [vmem:[#allocation3 + $0x18] sm:$0xff]
    %v169 = vld [vmem:[#allocation3 + $0x20] sm:$0xff]
    %v170 = vld [vmem:[#allocation3 + $0x28] sm:$0xff]
    %v171 = vld [vmem:[#allocation3 + $0x30] sm:$0xff]
    %v172 = vld [vmem:[#allocation3 + $0x38] sm:$0xff]
    %v173 = vld [vmem:[#allocation3 + $0x40] sm:$0xff]
    %v174 = vld [vmem:[#allocation3 + $0x48] sm:$0xff]
    %v175 = vld [vmem:[#allocation3 + $0x50] sm:$0xff]
    %v176 = vld [vmem:[#allocation3 + $0x58] sm:$0xff]
    %v177 = vld [vmem:[#allocation3 + $0x60] sm:$0xff]
    %v178 = vld [vmem:[#allocation3 + $0x68] sm:$0xff]
    %v179 = vld [vmem:[#allocation3 + $0x70] sm:$0xff]
    %v180 = vld [vmem:[#allocation3 + $0x78] sm:$0xff]
    %v181 = vld [vmem:[#allocation3 + $0x80] sm:$0xff]
    %v182 = vld [vmem:[#allocation3 + $0x88] sm:$0xff]
    %v183 = vld [vmem:[#allocation3 + $0x90] sm:$0xff]
    %v184 = vld [vmem:[#allocation3 + $0x98] sm:$0xff]
    %v185 = vld [vmem:[#allocation3 + $0xa0] sm:$0xff]
    %v186 = vld [vmem:[#allocation3 + $0xa8] sm:$0xff]
    %v187 = vld [vmem:[#allocation3 + $0xb0] sm:$0xff]
    %v188 = vld [vmem:[#allocation3 + $0xb8] sm:$0xff]
    %v189 = vld [vmem:[#allocation3 + $0xc0] sm:$0xff]
    %v190 = vld [vmem:[#allocation3 + $0xc8] sm:$0xff]
    %v191 = vld [vmem:[#allocation3 + $0xd0] sm:$0xff]
    %v192 = vld [vmem:[#allocation3 + $0xd8] sm:$0xff]
    %v193 = vld [vmem:[#allocation3 + $0xe0] sm:$0xff]
    %v194 = vld [vmem:[#allocation3 + $0xe8] sm:$0xff]
    %v195 = vld [vmem:[#allocation3 + $0xf0] sm:$0xff]
    %v196 = vld [vmem:[#allocation3 + $0xf8] sm:$0xff]
    %v229 = vunpack.c.l.b16 %v165
    %v230 = vunpack.c.h.b16 %v165
    %v231 = vunpack.c.l.b16 %v166
    %v232 = vunpack.c.h.b16 %v166
    %v233 = vunpack.c.l.b16 %v167
    %v234 = vunpack.c.h.b16 %v167
    %v235 = vunpack.c.l.b16 %v168
    %v236 = vunpack.c.h.b16 %v168
    %v237 = vunpack.c.l.b16 %v169
    %v238 = vunpack.c.h.b16 %v169
    %v239 = vunpack.c.l.b16 %v170
    %v240 = vunpack.c.h.b16 %v170
    %v241 = vunpack.c.l.b16 %v171
    %v242 = vunpack.c.h.b16 %v171
    %v243 = vunpack.c.l.b16 %v172
    %v244 = vunpack.c.h.b16 %v172
    %v245 = vunpack.c.l.b16 %v173
    %v246 = vunpack.c.h.b16 %v173
    %v247 = vunpack.c.l.b16 %v174
    %v248 = vunpack.c.h.b16 %v174
    %v249 = vunpack.c.l.b16 %v175
    %v250 = vunpack.c.h.b16 %v175
    %v251 = vunpack.c.l.b16 %v176
    %v252 = vunpack.c.h.b16 %v176
    %v253 = vunpack.c.l.b16 %v177
    %v254 = vunpack.c.h.b16 %v177
    %v255 = vunpack.c.l.b16 %v178
    %v256 = vunpack.c.h.b16 %v178
    %v257 = vunpack.c.l.b16 %v179
    %v258 = vunpack.c.h.b16 %v179
    %v259 = vunpack.c.l.b16 %v180
    %v260 = vunpack.c.h.b16 %v180
    %v261 = vunpack.c.l.b16 %v181
    %v262 = vunpack.c.h.b16 %v181
    %v263 = vunpack.c.l.b16 %v182
    %v264 = vunpack.c.h.b16 %v182
    %v265 = vunpack.c.l.b16 %v183
    %v266 = vunpack.c.h.b16 %v183
    %v267 = vunpack.c.l.b16 %v184
    %v268 = vunpack.c.h.b16 %v184
    %v269 = vunpack.c.l.b16 %v185
    %v270 = vunpack.c.h.b16 %v185
    %v271 = vunpack.c.l.b16 %v186
    %v272 = vunpack.c.h.b16 %v186
    %v273 = vunpack.c.l.b16 %v187
    %v274 = vunpack.c.h.b16 %v187
    %v275 = vunpack.c.l.b16 %v188
    %v276 = vunpack.c.h.b16 %v188
    %v277 = vunpack.c.l.b16 %v189
    %v278 = vunpack.c.h.b16 %v189
    %v279 = vunpack.c.l.b16 %v190
    %v280 = vunpack.c.h.b16 %v190
    %v281 = vunpack.c.l.b16 %v191
    %v282 = vunpack.c.h.b16 %v191
    %v283 = vunpack.c.l.b16 %v192
    %v284 = vunpack.c.h.b16 %v192
    %v285 = vunpack.c.l.b16 %v193
    %v286 = vunpack.c.h.b16 %v193
    %v287 = vunpack.c.l.b16 %v194
    %v288 = vunpack.c.h.b16 %v194
    %v289 = vunpack.c.l.b16 %v195
    %v290 = vunpack.c.h.b16 %v195
    %v291 = vunpack.c.l.b16 %v196
    %v292 = vunpack.c.h.b16 %v196
    %v293 = vpack.c.b16 %v231, %v229
    %v294 = vpack.c.b16 %v232, %v230
    %v295 = vpack.c.b16 %v235, %v233
    %v296 = vpack.c.b16 %v236, %v234
    %v297 = vpack.c.b16 %v239, %v237
    %v298 = vpack.c.b16 %v240, %v238
    %v299 = vpack.c.b16 %v243, %v241
    %v300 = vpack.c.b16 %v244, %v242
    %v301 = vpack.c.b16 %v247, %v245
    %v302 = vpack.c.b16 %v248, %v246
    %v303 = vpack.c.b16 %v251, %v249
    %v304 = vpack.c.b16 %v252, %v250
    %v305 = vpack.c.b16 %v255, %v253
    %v306 = vpack.c.b16 %v256, %v254
    %v307 = vpack.c.b16 %v259, %v257
    %v308 = vpack.c.b16 %v260, %v258
    %v309 = vpack.c.b16 %v263, %v261
    %v310 = vpack.c.b16 %v264, %v262
    %v311 = vpack.c.b16 %v267, %v265
    %v312 = vpack.c.b16 %v268, %v266
    %v313 = vpack.c.b16 %v271, %v269
    %v314 = vpack.c.b16 %v272, %v270
    %v315 = vpack.c.b16 %v275, %v273
    %v316 = vpack.c.b16 %v276, %v274
    %v317 = vpack.c.b16 %v279, %v277
    %v318 = vpack.c.b16 %v280, %v278
    %v319 = vpack.c.b16 %v283, %v281
    %v320 = vpack.c.b16 %v284, %v282
    %v321 = vpack.c.b16 %v287, %v285
    %v322 = vpack.c.b16 %v288, %v286
    %v323 = vpack.c.b16 %v291, %v289
    %v324 = vpack.c.b16 %v292, %v290
    %v389 = vunpack.c.l.b16 %v101
    %v390 = vunpack.c.l.b16 %v102
    %v391 = vunpack.c.l.b16 %v103
    %v392 = vunpack.c.l.b16 %v104
    %v393 = vunpack.c.l.b16 %v105
    %v394 = vunpack.c.l.b16 %v106
    %v395 = vunpack.c.l.b16 %v107
    %v396 = vunpack.c.l.b16 %v108
    %v397 = vunpack.c.l.b16 %v109
    %v398 = vunpack.c.l.b16 %v110
    %v399 = vunpack.c.l.b16 %v111
    %v400 = vunpack.c.l.b16 %v112
    %v401 = vunpack.c.l.b16 %v113
    %v402 = vunpack.c.l.b16 %v114
    %v403 = vunpack.c.l.b16 %v115
    %v404 = vunpack.c.l.b16 %v116
    %v405 = vunpack.c.l.b16 %v117
    %v406 = vunpack.c.l.b16 %v118
    %v407 = vunpack.c.l.b16 %v119
    %v408 = vunpack.c.l.b16 %v120
    %v409 = vunpack.c.l.b16 %v121
    %v410 = vunpack.c.l.b16 %v122
    %v411 = vunpack.c.l.b16 %v123
    %v412 = vunpack.c.l.b16 %v124
    %v413 = vunpack.c.l.b16 %v125
    %v414 = vunpack.c.l.b16 %v126
    %v415 = vunpack.c.l.b16 %v127
    %v416 = vunpack.c.l.b16 %v128
    %v417 = vunpack.c.l.b16 %v129
    %v418 = vunpack.c.l.b16 %v130
    %v419 = vunpack.c.l.b16 %v131
    %v420 = vunpack.c.l.b16 %v132
    %v421 = vpack.c.b16 %v390, %v389
    %v422 = vpack.c.b16 %v392, %v391
    %v423 = vpack.c.b16 %v394, %v393
    %v424 = vpack.c.b16 %v396, %v395
    %v425 = vpack.c.b16 %v398, %v397
    %v426 = vpack.c.b16 %v400, %v399
    %v427 = vpack.c.b16 %v402, %v401
    %v428 = vpack.c.b16 %v404, %v403
    %v429 = vpack.c.b16 %v406, %v405
    %v430 = vpack.c.b16 %v408, %v407
    %v431 = vpack.c.b16 %v410, %v409
    %v432 = vpack.c.b16 %v412, %v411
    %v433 = vpack.c.b16 %v414, %v413
    %v434 = vpack.c.b16 %v416, %v415
    %v435 = vpack.c.b16 %v418, %v417
    %v436 = vpack.c.b16 %v420, %v419
    %453 = vmatprep.subr.bf16.mxu0 0
    %454 = vmatpush1.bf16.msra.mxu0 %v421
    %455 = vmatprep.subr.bf16.mxu0 0
    %456 = vmatpush1.bf16.msra.mxu0 %v422
    %457 = vmatprep.subr.bf16.mxu0 0
    %458 = vmatpush1.bf16.msra.mxu0 %v423
    %459 = vmatprep.subr.bf16.mxu0 0
    %460 = vmatpush1.bf16.msra.mxu0 %v424
    %461 = vmatprep.subr.bf16.mxu0 0
    %462 = vmatpush1.bf16.msra.mxu0 %v425
    %463 = vmatprep.subr.bf16.mxu0 0
    %464 = vmatpush1.bf16.msra.mxu0 %v426
    %465 = vmatprep.subr.bf16.mxu0 0
    %466 = vmatpush1.bf16.msra.mxu0 %v427
    %467 = vmatprep.subr.bf16.mxu0 0
    %468 = vmatpush1.bf16.msra.mxu0 %v428
    %469 = vmatprep.subr.bf16.mxu0 0
    %470 = vmatpush1.bf16.msra.mxu0 %v429
    %471 = vmatprep.subr.bf16.mxu0 0
    %472 = vmatpush1.bf16.msra.mxu0 %v430
    %473 = vmatprep.subr.bf16.mxu0 0
    %474 = vmatpush1.bf16.msra.mxu0 %v431
    %475 = vmatprep.subr.bf16.mxu0 0
    %476 = vmatpush1.bf16.msra.mxu0 %v432
    %477 = vmatprep.subr.bf16.mxu0 0
    %478 = vmatpush1.bf16.msra.mxu0 %v433
    %479 = vmatprep.subr.bf16.mxu0 0
    %480 = vmatpush1.bf16.msra.mxu0 %v434
    %481 = vmatprep.subr.bf16.mxu0 0
    %482 = vmatpush1.bf16.msra.mxu0 %v435
    %483 = vmatprep.subr.bf16.mxu0 0
    %484 = vmatpush1.bf16.msra.mxu0 %v436
    %485 = vmatprep.mubr.bf16.mxu0 %v294
    %486 = vmatmul.mubr.bf16.gmra.mrb[0].mxu0 %v293
    %v487 = vpop.f32.mrb[0].mxu0
    %v488 = vadd.f32 0.0, %v487
    %v489 = vpop.f32.mrb[0].mxu0
    %v490 = vpop.f32.mrb[0].mxu0
    %v491 = vadd.f32 0.0, %v490
    %v492 = vpop.f32.mrb[0].mxu0
    %493 = vmatprep.mubr.bf16.mxu0 %v296
    %494 = vmatmul.mubr.bf16.gmra.mrb[0].mxu0 %v295
    %v495 = vpop.f32.mrb[0].mxu0
    %v496 = vadd.f32 0.0, %v495
    %v497 = vpop.f32.mrb[0].mxu0
    %v498 = vpop.f32.mrb[0].mxu0
    %v499 = vadd.f32 0.0, %v498
    %v500 = vpop.f32.mrb[0].mxu0
    %501 = vmatprep.mubr.bf16.mxu0 %v298
    %502 = vmatmul.mubr.bf16.gmra.mrb[0].mxu0 %v297
    %v503 = vpop.f32.mrb[0].mxu0
    %v504 = vadd.f32 0.0, %v503
    %v505 = vpop.f32.mrb[0].mxu0
    %v506 = vpop.f32.mrb[0].mxu0
    %v507 = vadd.f32 0.0, %v506
    %v508 = vpop.f32.mrb[0].mxu0
    %509 = vmatprep.mubr.bf16.mxu0 %v300
    %510 = vmatmul.mubr.bf16.gmra.mrb[0].mxu0 %v299
    %v511 = vpop.f32.mrb[0].mxu0
    %v512 = vadd.f32 0.0, %v511
    %v513 = vpop.f32.mrb[0].mxu0
    %v514 = vpop.f32.mrb[0].mxu0
    %v515 = vadd.f32 0.0, %v514
    %v516 = vpop.f32.mrb[0].mxu0
    %517 = vmatprep.mubr.bf16.mxu0 %v302
    %518 = vmatmul.mubr.bf16.gmra.mrb[0].mxu0 %v301
    %v519 = vpop.f32.mrb[0].mxu0
    %v520 = vadd.f32 0.0, %v519
    %v521 = vpop.f32.mrb[0].mxu0
    %v522 = vpop.f32.mrb[0].mxu0
    %v523 = vadd.f32 0.0, %v522
    %v524 = vpop.f32.mrb[0].mxu0
    %525 = vmatprep.mubr.bf16.mxu0 %v304
    %526 = vmatmul.mubr.bf16.gmra.mrb[0].mxu0 %v303
    %v527 = vpop.f32.mrb[0].mxu0
    %v528 = vadd.f32 0.0, %v527
    %v529 = vpop.f32.mrb[0].mxu0
    %v530 = vpop.f32.mrb[0].mxu0
    %v531 = vadd.f32 0.0, %v530
    %v532 = vpop.f32.mrb[0].mxu0
    %533 = vmatprep.mubr.bf16.mxu0 %v306
    %534 = vmatmul.mubr.bf16.gmra.mrb[0].mxu0 %v305
    %v535 = vpop.f32.mrb[0].mxu0
    %v536 = vadd.f32 0.0, %v535
    %v537 = vpop.f32.mrb[0].mxu0
    %v538 = vpop.f32.mrb[0].mxu0
    %v539 = vadd.f32 0.0, %v538
    %v540 = vpop.f32.mrb[0].mxu0
    %541 = vmatprep.mubr.bf16.mxu0 %v308
    %542 = vmatmul.mubr.bf16.gmra.mrb[0].mxu0 %v307
    %v543 = vpop.f32.mrb[0].mxu0
    %v544 = vadd.f32 0.0, %v543
    %v545 = vpop.f32.mrb[0].mxu0
    %v546 = vpop.f32.mrb[0].mxu0
    %v547 = vadd.f32 0.0, %v546
    %v548 = vpop.f32.mrb[0].mxu0
    %549 = vmatprep.mubr.bf16.mxu0 %v310
    %550 = vmatmul.mubr.bf16.gmra.mrb[0].mxu0 %v309
    %v551 = vpop.f32.mrb[0].mxu0
    %v552 = vadd.f32 0.0, %v551
    %v553 = vpop.f32.mrb[0].mxu0
    %v554 = vpop.f32.mrb[0].mxu0
    %v555 = vadd.f32 0.0, %v554
    %v556 = vpop.f32.mrb[0].mxu0
    %557 = vmatprep.mubr.bf16.mxu0 %v312
    %558 = vmatmul.mubr.bf16.gmra.mrb[0].mxu0 %v311
    %v559 = vpop.f32.mrb[0].mxu0
    %v560 = vadd.f32 0.0, %v559
    %v561 = vpop.f32.mrb[0].mxu0
    %v562 = vpop.f32.mrb[0].mxu0
    %v563 = vadd.f32 0.0, %v562
    %v564 = vpop.f32.mrb[0].mxu0
    %565 = vmatprep.mubr.bf16.mxu0 %v314
    %566 = vmatmul.mubr.bf16.gmra.mrb[0].mxu0 %v313
    %v567 = vpop.f32.mrb[0].mxu0
    %v568 = vadd.f32 0.0, %v567
    %v569 = vpop.f32.mrb[0].mxu0
    %v570 = vpop.f32.mrb[0].mxu0
    %v571 = vadd.f32 0.0, %v570
    %v572 = vpop.f32.mrb[0].mxu0
    %573 = vmatprep.mubr.bf16.mxu0 %v316
    %574 = vmatmul.mubr.bf16.gmra.mrb[0].mxu0 %v315
    %v575 = vpop.f32.mrb[0].mxu0
    %v576 = vadd.f32 0.0, %v575
    %v577 = vpop.f32.mrb[0].mxu0
    %v578 = vpop.f32.mrb[0].mxu0
    %v579 = vadd.f32 0.0, %v578
    %v580 = vpop.f32.mrb[0].mxu0
    %581 = vmatprep.mubr.bf16.mxu0 %v318
    %582 = vmatmul.mubr.bf16.gmra.mrb[0].mxu0 %v317
    %v583 = vpop.f32.mrb[0].mxu0
    %v584 = vadd.f32 0.0, %v583
    %v585 = vpop.f32.mrb[0].mxu0
    %v586 = vpop.f32.mrb[0].mxu0
    %v587 = vadd.f32 0.0, %v586
    %v588 = vpop.f32.mrb[0].mxu0
    %589 = vmatprep.mubr.bf16.mxu0 %v320
    %590 = vmatmul.mubr.bf16.gmra.mrb[0].mxu0 %v319
    %v591 = vpop.f32.mrb[0].mxu0
    %v592 = vadd.f32 0.0, %v591
    %v593 = vpop.f32.mrb[0].mxu0
    %v594 = vpop.f32.mrb[0].mxu0
    %v595 = vadd.f32 0.0, %v594
    %v596 = vpop.f32.mrb[0].mxu0
    %597 = vmatprep.mubr.bf16.mxu0 %v322
    %598 = vmatmul.mubr.bf16.gmra.mrb[0].mxu0 %v321
    %v599 = vpop.f32.mrb[0].mxu0
    %v600 = vadd.f32 0.0, %v599
    %v601 = vpop.f32.mrb[0].mxu0
    %v602 = vpop.f32.mrb[0].mxu0
    %v603 = vadd.f32 0.0, %v602
    %v604 = vpop.f32.mrb[0].mxu0
    %605 = vmatprep.mubr.bf16.mxu0 %v324
    %606 = vmatmul.mubr.bf16.gmra.mrb[0].mxu0 %v323
    %v607 = vpop.f32.mrb[0].mxu0
    %v608 = vadd.f32 0.0, %v607
    %v609 = vpop.f32.mrb[0].mxu0
    %v610 = vpop.f32.mrb[0].mxu0
    %v611 = vadd.f32 0.0, %v610
    %v612 = vpop.f32.mrb[0].mxu0
    %613 = vdwg.mxu0
    %v614 = vadd.f32 %v133, %v488
    %v615 = vadd.f32 %v134, %v491
    %v616 = vadd.f32 %v135, %v496
    %v617 = vadd.f32 %v136, %v499
    %v618 = vadd.f32 %v137, %v504
    %v619 = vadd.f32 %v138, %v507
    %v620 = vadd.f32 %v139, %v512
    %v621 = vadd.f32 %v140, %v515
    %v622 = vadd.f32 %v141, %v520
    %v623 = vadd.f32 %v142, %v523
    %v624 = vadd.f32 %v143, %v528
    %v625 = vadd.f32 %v144, %v531
    %v626 = vadd.f32 %v145, %v536
    %v627 = vadd.f32 %v146, %v539
    %v628 = vadd.f32 %v147, %v544
    %v629 = vadd.f32 %v148, %v547
    %v630 = vadd.f32 %v149, %v552
    %v631 = vadd.f32 %v150, %v555
    %v632 = vadd.f32 %v151, %v560
    %v633 = vadd.f32 %v152, %v563
    %v634 = vadd.f32 %v153, %v568
    %v635 = vadd.f32 %v154, %v571
    %v636 = vadd.f32 %v155, %v576
    %v637 = vadd.f32 %v156, %v579
    %v638 = vadd.f32 %v157, %v584
    %v639 = vadd.f32 %v158, %v587
    %v640 = vadd.f32 %v159, %v592
    %v641 = vadd.f32 %v160, %v595
    %v642 = vadd.f32 %v161, %v600
    %v643 = vadd.f32 %v162, %v603
    %v644 = vadd.f32 %v163, %v608
    %v645 = vadd.f32 %v164, %v611
    %646 = vst [vmem:[#allocation2] sm:$0xff] %v614
    %647 = vst [vmem:[#allocation2 + $0x8] sm:$0xff] %v615
    %648 = vst [vmem:[#allocation2 + $0x10] sm:$0xff] %v616
    %649 = vst [vmem:[#allocation2 + $0x18] sm:$0xff] %v617
    %650 = vst [vmem:[#allocation2 + $0x20] sm:$0xff] %v618
    %651 = vst [vmem:[#allocation2 + $0x28] sm:$0xff] %v619
    %652 = vst [vmem:[#allocation2 + $0x30] sm:$0xff] %v620
    %653 = vst [vmem:[#allocation2 + $0x38] sm:$0xff] %v621
    %654 = vst [vmem:[#allocation2 + $0x40] sm:$0xff] %v622
    %655 = vst [vmem:[#allocation2 + $0x48] sm:$0xff] %v623
    %656 = vst [vmem:[#allocation2 + $0x50] sm:$0xff] %v624
    %657 = vst [vmem:[#allocation2 + $0x58] sm:$0xff] %v625
    %658 = vst [vmem:[#allocation2 + $0x60] sm:$0xff] %v626
    %659 = vst [vmem:[#allocation2 + $0x68] sm:$0xff] %v627
    %660 = vst [vmem:[#allocation2 + $0x70] sm:$0xff] %v628
    %661 = vst [vmem:[#allocation2 + $0x78] sm:$0xff] %v629
    %662 = vst [vmem:[#allocation2 + $0x80] sm:$0xff] %v630
    %663 = vst [vmem:[#allocation2 + $0x88] sm:$0xff] %v631
    %664 = vst [vmem:[#allocation2 + $0x90] sm:$0xff] %v632
    %665 = vst [vmem:[#allocation2 + $0x98] sm:$0xff] %v633
    %666 = vst [vmem:[#allocation2 + $0xa0] sm:$0xff] %v634
    %667 = vst [vmem:[#allocation2 + $0xa8] sm:$0xff] %v635
    %668 = vst [vmem:[#allocation2 + $0xb0] sm:$0xff] %v636
    %669 = vst [vmem:[#allocation2 + $0xb8] sm:$0xff] %v637
    %670 = vst [vmem:[#allocation2 + $0xc0] sm:$0xff] %v638
    %671 = vst [vmem:[#allocation2 + $0xc8] sm:$0xff] %v639
    %672 = vst [vmem:[#allocation2 + $0xd0] sm:$0xff] %v640
    %673 = vst [vmem:[#allocation2 + $0xd8] sm:$0xff] %v641
    %674 = vst [vmem:[#allocation2 + $0xe0] sm:$0xff] %v642
    %675 = vst [vmem:[#allocation2 + $0xe8] sm:$0xff] %v643
    %676 = vst [vmem:[#allocation2 + $0xf0] sm:$0xff] %v644
    %677 = vst [vmem:[#allocation2 + $0xf8] sm:$0xff] %v645
    // Predicated region
    $region34: #{tpu_custom_call.1} parent=1 // pred_check
      %p678 = pneg %p60
    $region35: #{tpu_custom_call.1} parent=1 // pred_check_branch
      %680 = sbr.rel (%p678) target = $region37
    $region36: #{tpu_custom_call.1} parent=1 // pred_region
      %v681 = vld [vmem:[#allocation2] sm:$0xff]
      %v682 = vld [vmem:[#allocation2 + $0x8] sm:$0xff]
      %v683 = vld [vmem:[#allocation2 + $0x10] sm:$0xff]
      %v684 = vld [vmem:[#allocation2 + $0x18] sm:$0xff]
      %v685 = vld [vmem:[#allocation2 + $0x20] sm:$0xff]
      %v686 = vld [vmem:[#allocation2 + $0x28] sm:$0xff]
      %v687 = vld [vmem:[#allocation2 + $0x30] sm:$0xff]
      %v688 = vld [vmem:[#allocation2 + $0x38] sm:$0xff]
      %v689 = vld [vmem:[#allocation2 + $0x40] sm:$0xff]
      %v690 = vld [vmem:[#allocation2 + $0x48] sm:$0xff]
      %v691 = vld [vmem:[#allocation2 + $0x50] sm:$0xff]
      %v692 = vld [vmem:[#allocation2 + $0x58] sm:$0xff]
      %v693 = vld [vmem:[#allocation2 + $0x60] sm:$0xff]
      %v694 = vld [vmem:[#allocation2 + $0x68] sm:$0xff]
      %v695 = vld [vmem:[#allocation2 + $0x70] sm:$0xff]
      %v696 = vld [vmem:[#allocation2 + $0x78] sm:$0xff]
      %v697 = vld [vmem:[#allocation2 + $0x80] sm:$0xff]
      %v698 = vld [vmem:[#allocation2 + $0x88] sm:$0xff]
      %v699 = vld [vmem:[#allocation2 + $0x90] sm:$0xff]
      %v700 = vld [vmem:[#allocation2 + $0x98] sm:$0xff]
      %v701 = vld [vmem:[#allocation2 + $0xa0] sm:$0xff]
      %v702 = vld [vmem:[#allocation2 + $0xa8] sm:$0xff]
      %v703 = vld [vmem:[#allocation2 + $0xb0] sm:$0xff]
      %v704 = vld [vmem:[#allocation2 + $0xb8] sm:$0xff]
      %v705 = vld [vmem:[#allocation2 + $0xc0] sm:$0xff]
      %v706 = vld [vmem:[#allocation2 + $0xc8] sm:$0xff]
      %v707 = vld [vmem:[#allocation2 + $0xd0] sm:$0xff]
      %v708 = vld [vmem:[#allocation2 + $0xd8] sm:$0xff]
      %v709 = vld [vmem:[#allocation2 + $0xe0] sm:$0xff]
      %v710 = vld [vmem:[#allocation2 + $0xe8] sm:$0xff]
      %v711 = vld [vmem:[#allocation2 + $0xf0] sm:$0xff]
      %v712 = vld [vmem:[#allocation2 + $0xf8] sm:$0xff]
      %v713 = vld [vmem:[%s2] sm:$0x1]
      %v715 = vlaneseq
      %v716 = vshrl.u32 %v715, 7
      %v717 = vsub.s32 0, %v716
      %v718 = vrot.slane %v713, %v717
      %v720 = vadd.f32 %v681, %v718
      %v721 = vadd.f32 %v682, %v718
      %v722 = vadd.f32 %v683, %v718
      %v723 = vadd.f32 %v684, %v718
      %v724 = vadd.f32 %v685, %v718
      %v725 = vadd.f32 %v686, %v718
      %v726 = vadd.f32 %v687, %v718
      %v727 = vadd.f32 %v688, %v718
      %v728 = vadd.f32 %v689, %v718
      %v729 = vadd.f32 %v690, %v718
      %v730 = vadd.f32 %v691, %v718
      %v731 = vadd.f32 %v692, %v718
      %v732 = vadd.f32 %v693, %v718
      %v733 = vadd.f32 %v694, %v718
      %v734 = vadd.f32 %v695, %v718
      %v735 = vadd.f32 %v696, %v718
      %v736 = vadd.f32 %v697, %v718
      %v737 = vadd.f32 %v698, %v718
      %v738 = vadd.f32 %v699, %v718
      %v739 = vadd.f32 %v700, %v718
      %v740 = vadd.f32 %v701, %v718
      %v741 = vadd.f32 %v702, %v718
      %v742 = vadd.f32 %v703, %v718
      %v743 = vadd.f32 %v704, %v718
      %v744 = vadd.f32 %v705, %v718
      %v745 = vadd.f32 %v706, %v718
      %v746 = vadd.f32 %v707, %v718
      %v747 = vadd.f32 %v708, %v718
      %v748 = vadd.f32 %v709, %v718
      %v749 = vadd.f32 %v710, %v718
      %v750 = vadd.f32 %v711, %v718
      %v751 = vadd.f32 %v712, %v718
      %v752 = vmax.f32 %v720, 0.0
      %v753 = vmax.f32 %v721, 0.0
      %v754 = vmax.f32 %v722, 0.0
      %v755 = vmax.f32 %v723, 0.0
      %v756 = vmax.f32 %v724, 0.0
      %v757 = vmax.f32 %v725, 0.0
      %v758 = vmax.f32 %v726, 0.0
      %v759 = vmax.f32 %v727, 0.0
      %v760 = vmax.f32 %v728, 0.0
      %v761 = vmax.f32 %v729, 0.0
      %v762 = vmax.f32 %v730, 0.0
      %v763 = vmax.f32 %v731, 0.0
      %v764 = vmax.f32 %v732, 0.0
      %v765 = vmax.f32 %v733, 0.0
      %v766 = vmax.f32 %v734, 0.0
      %v767 = vmax.f32 %v735, 0.0
      %v768 = vmax.f32 %v736, 0.0
      %v769 = vmax.f32 %v737, 0.0
      %v770 = vmax.f32 %v738, 0.0
      %v771 = vmax.f32 %v739, 0.0
      %v772 = vmax.f32 %v740, 0.0
      %v773 = vmax.f32 %v741, 0.0
      %v774 = vmax.f32 %v742, 0.0
      %v775 = vmax.f32 %v743, 0.0
      %v776 = vmax.f32 %v744, 0.0
      %v777 = vmax.f32 %v745, 0.0
      %v778 = vmax.f32 %v746, 0.0
      %v779 = vmax.f32 %v747, 0.0
      %v780 = vmax.f32 %v748, 0.0
      %v781 = vmax.f32 %v749, 0.0
      %v782 = vmax.f32 %v750, 0.0
      %v783 = vmax.f32 %v751, 0.0
      %v784 = vpack.c.bf16 %v753, %v752
      %v785 = vpack.c.bf16 %v755, %v754
      %v786 = vpack.c.bf16 %v757, %v756
      %v787 = vpack.c.bf16 %v759, %v758
      %v788 = vpack.c.bf16 %v761, %v760
      %v789 = vpack.c.bf16 %v763, %v762
      %v790 = vpack.c.bf16 %v765, %v764
      %v791 = vpack.c.bf16 %v767, %v766
      %v792 = vpack.c.bf16 %v769, %v768
      %v793 = vpack.c.bf16 %v771, %v770
      %v794 = vpack.c.bf16 %v773, %v772
      %v795 = vpack.c.bf16 %v775, %v774
      %v796 = vpack.c.bf16 %v777, %v776
      %v797 = vpack.c.bf16 %v779, %v778
      %v798 = vpack.c.bf16 %v781, %v780
      %v799 = vpack.c.bf16 %v783, %v782
      %v800 = vld [vmem:[#allocation8] sm:$0xf]
      %v801 = vld [vmem:[#allocation8 + $0x4] sm:$0xf]
      %v802 = vld [vmem:[#allocation8 + $0x8] sm:$0xf]
      %v803 = vld [vmem:[#allocation8 + $0xc] sm:$0xf]
      %v804 = vld [vmem:[#allocation8 + $0x10] sm:$0xf]
      %v805 = vld [vmem:[#allocation8 + $0x14] sm:$0xf]
      %v806 = vld [vmem:[#allocation8 + $0x18] sm:$0xf]
      %v807 = vld [vmem:[#allocation8 + $0x1c] sm:$0xf]
      %v808 = vld [vmem:[#allocation8 + $0x20] sm:$0xf]
      %v809 = vld [vmem:[#allocation8 + $0x24] sm:$0xf]
      %v810 = vld [vmem:[#allocation8 + $0x28] sm:$0xf]
      %v811 = vld [vmem:[#allocation8 + $0x2c] sm:$0xf]
      %v812 = vld [vmem:[#allocation8 + $0x30] sm:$0xf]
      %v813 = vld [vmem:[#allocation8 + $0x34] sm:$0xf]
      %v814 = vld [vmem:[#allocation8 + $0x38] sm:$0xf]
      %v815 = vld [vmem:[#allocation8 + $0x3c] sm:$0xf]
      %v832 = vunpack.c.l.b16 %v800
      %v833 = vunpack.c.l.b16 %v801
      %v834 = vunpack.c.l.b16 %v802
      %v835 = vunpack.c.l.b16 %v803
      %v836 = vunpack.c.l.b16 %v804
      %v837 = vunpack.c.l.b16 %v805
      %v838 = vunpack.c.l.b16 %v806
      %v839 = vunpack.c.l.b16 %v807
      %v840 = vunpack.c.l.b16 %v808
      %v841 = vunpack.c.l.b16 %v809
      %v842 = vunpack.c.l.b16 %v810
      %v843 = vunpack.c.l.b16 %v811
      %v844 = vunpack.c.l.b16 %v812
      %v845 = vunpack.c.l.b16 %v813
      %v846 = vunpack.c.l.b16 %v814
      %v847 = vunpack.c.l.b16 %v815
      %v848 = vpack.c.b16 %v833, %v832
      %v849 = vpack.c.b16 %v835, %v834
      %v850 = vpack.c.b16 %v837, %v836
      %v851 = vpack.c.b16 %v839, %v838
      %v852 = vpack.c.b16 %v841, %v840
      %v853 = vpack.c.b16 %v843, %v842
      %v854 = vpack.c.b16 %v845, %v844
      %v855 = vpack.c.b16 %v847, %v846
      %864 = vmatprep.subr.bf16.mxu0 0
      %865 = vmatpush1.bf16.msra.mxu0 %v848
      %866 = vmatprep.subr.bf16.mxu0 0
      %867 = vmatpush1.bf16.msra.mxu0 %v849
      %868 = vmatprep.subr.bf16.mxu0 0
      %869 = vmatpush1.bf16.msra.mxu0 %v850
      %870 = vmatprep.subr.bf16.mxu0 0
      %871 = vmatpush1.bf16.msra.mxu0 %v851
      %872 = vmatprep.subr.bf16.mxu0 0
      %873 = vmatpush1.bf16.msra.mxu0 %v852
      %874 = vmatprep.subr.bf16.mxu0 0
      %875 = vmatpush1.bf16.msra.mxu0 %v853
      %876 = vmatprep.subr.bf16.mxu0 0
      %877 = vmatpush1.bf16.msra.mxu0 %v854
      %878 = vmatprep.subr.bf16.mxu0 0
      %879 = vmatpush1.bf16.msra.mxu0 %v855
      %880 = vmatprep.subr.bf16.mxu0 0
      %881 = vmatpush1.bf16.msra.mxu0 0
      %882 = vmatprep.subr.bf16.mxu0 0
      %883 = vmatpush1.bf16.msra.mxu0 0
      %884 = vmatprep.subr.bf16.mxu0 0
      %885 = vmatpush1.bf16.msra.mxu0 0
      %886 = vmatprep.subr.bf16.mxu0 0
      %887 = vmatpush1.bf16.msra.mxu0 0
      %888 = vmatprep.subr.bf16.mxu0 0
      %889 = vmatpush1.bf16.msra.mxu0 0
      %890 = vmatprep.subr.bf16.mxu0 0
      %891 = vmatpush1.bf16.msra.mxu0 0
      %892 = vmatprep.subr.bf16.mxu0 0
      %893 = vmatpush1.bf16.msra.mxu0 0
      %894 = vmatprep.subr.bf16.mxu0 0
      %895 = vmatpush1.bf16.msra.mxu0 0
      %896 = vmatprep.mubr.bf16.mxu0 0
      %897 = vmatmul.mubr.bf16.gmra.mrb[0].mxu0 %v784
      %v898 = vpop.f32.mrb[0].mxu0
      %v899 = vadd.f32 0.0, %v898
      %v900 = vpop.f32.mrb[0].mxu0
      %v901 = vpop.f32.mrb[0].mxu0
      %v902 = vadd.f32 0.0, %v901
      %v903 = vpop.f32.mrb[0].mxu0
      %904 = vmatprep.mubr.bf16.mxu0 0
      %905 = vmatmul.mubr.bf16.gmra.mrb[0].mxu0 %v785
      %v906 = vpop.f32.mrb[0].mxu0
      %v907 = vadd.f32 0.0, %v906
      %v908 = vpop.f32.mrb[0].mxu0
      %v909 = vpop.f32.mrb[0].mxu0
      %v910 = vadd.f32 0.0, %v909
      %v911 = vpop.f32.mrb[0].mxu0
      %912 = vmatprep.mubr.bf16.mxu0 0
      %913 = vmatmul.mubr.bf16.gmra.mrb[0].mxu0 %v786
      %v914 = vpop.f32.mrb[0].mxu0
      %v915 = vadd.f32 0.0, %v914
      %v916 = vpop.f32.mrb[0].mxu0
      %v917 = vpop.f32.mrb[0].mxu0
      %v918 = vadd.f32 0.0, %v917
      %v919 = vpop.f32.mrb[0].mxu0
      %920 = vmatprep.mubr.bf16.mxu0 0
      %921 = vmatmul.mubr.bf16.gmra.mrb[0].mxu0 %v787
      %v922 = vpop.f32.mrb[0].mxu0
      %v923 = vadd.f32 0.0, %v922
      %v924 = vpop.f32.mrb[0].mxu0
      %v925 = vpop.f32.mrb[0].mxu0
      %v926 = vadd.f32 0.0, %v925
      %v927 = vpop.f32.mrb[0].mxu0
      %928 = vmatprep.mubr.bf16.mxu0 0
      %929 = vmatmul.mubr.bf16.gmra.mrb[0].mxu0 %v788
      %v930 = vpop.f32.mrb[0].mxu0
      %v931 = vadd.f32 0.0, %v930
      %v932 = vpop.f32.mrb[0].mxu0
      %v933 = vpop.f32.mrb[0].mxu0
      %v934 = vadd.f32 0.0, %v933
      %v935 = vpop.f32.mrb[0].mxu0
      %936 = vmatprep.mubr.bf16.mxu0 0
      %937 = vmatmul.mubr.bf16.gmra.mrb[0].mxu0 %v789
      %v938 = vpop.f32.mrb[0].mxu0
      %v939 = vadd.f32 0.0, %v938
      %v940 = vpop.f32.mrb[0].mxu0
      %v941 = vpop.f32.mrb[0].mxu0
      %v942 = vadd.f32 0.0, %v941
      %v943 = vpop.f32.mrb[0].mxu0
      %944 = vmatprep.mubr.bf16.mxu0 0
      %945 = vmatmul.mubr.bf16.gmra.mrb[0].mxu0 %v790
      %v946 = vpop.f32.mrb[0].mxu0
      %v947 = vadd.f32 0.0, %v946
      %v948 = vpop.f32.mrb[0].mxu0
      %v949 = vpop.f32.mrb[0].mxu0
      %v950 = vadd.f32 0.0, %v949
      %v951 = vpop.f32.mrb[0].mxu0
      %952 = vmatprep.mubr.bf16.mxu0 0
      %953 = vmatmul.mubr.bf16.gmra.mrb[0].mxu0 %v791
      %v954 = vpop.f32.mrb[0].mxu0
      %v955 = vadd.f32 0.0, %v954
      %v956 = vpop.f32.mrb[0].mxu0
      %v957 = vpop.f32.mrb[0].mxu0
      %v958 = vadd.f32 0.0, %v957
      %v959 = vpop.f32.mrb[0].mxu0
      %960 = vmatprep.mubr.bf16.mxu0 0
      %961 = vmatmul.mubr.bf16.gmra.mrb[0].mxu0 %v792
      %v962 = vpop.f32.mrb[0].mxu0
      %v963 = vadd.f32 0.0, %v962
      %v964 = vpop.f32.mrb[0].mxu0
      %v965 = vpop.f32.mrb[0].mxu0
      %v966 = vadd.f32 0.0, %v965
      %v967 = vpop.f32.mrb[0].mxu0
      %968 = vmatprep.mubr.bf16.mxu0 0
      %969 = vmatmul.mubr.bf16.gmra.mrb[0].mxu0 %v793
      %v970 = vpop.f32.mrb[0].mxu0
      %v971 = vadd.f32 0.0, %v970
      %v972 = vpop.f32.mrb[0].mxu0
      %v973 = vpop.f32.mrb[0].mxu0
      %v974 = vadd.f32 0.0, %v973
      %v975 = vpop.f32.mrb[0].mxu0
      %976 = vmatprep.mubr.bf16.mxu0 0
      %977 = vmatmul.mubr.bf16.gmra.mrb[0].mxu0 %v794
      %v978 = vpop.f32.mrb[0].mxu0
      %v979 = vadd.f32 0.0, %v978
      %v980 = vpop.f32.mrb[0].mxu0
      %v981 = vpop.f32.mrb[0].mxu0
      %v982 = vadd.f32 0.0, %v981
      %v983 = vpop.f32.mrb[0].mxu0
      %984 = vmatprep.mubr.bf16.mxu0 0
      %985 = vmatmul.mubr.bf16.gmra.mrb[0].mxu0 %v795
      %v986 = vpop.f32.mrb[0].mxu0
      %v987 = vadd.f32 0.0, %v986
      %v988 = vpop.f32.mrb[0].mxu0
      %v989 = vpop.f32.mrb[0].mxu0
      %v990 = vadd.f32 0.0, %v989
      %v991 = vpop.f32.mrb[0].mxu0
      %992 = vmatprep.mubr.bf16.mxu0 0
      %993 = vmatmul.mubr.bf16.gmra.mrb[0].mxu0 %v796
      %v994 = vpop.f32.mrb[0].mxu0
      %v995 = vadd.f32 0.0, %v994
      %v996 = vpop.f32.mrb[0].mxu0
      %v997 = vpop.f32.mrb[0].mxu0
      %v998 = vadd.f32 0.0, %v997
      %v999 = vpop.f32.mrb[0].mxu0
      %1000 = vmatprep.mubr.bf16.mxu0 0
      %1001 = vmatmul.mubr.bf16.gmra.mrb[0].mxu0 %v797
      %v1002 = vpop.f32.mrb[0].mxu0
      %v1003 = vadd.f32 0.0, %v1002
      %v1004 = vpop.f32.mrb[0].mxu0
      %v1005 = vpop.f32.mrb[0].mxu0
      %v1006 = vadd.f32 0.0, %v1005
      %v1007 = vpop.f32.mrb[0].mxu0
      %1008 = vmatprep.mubr.bf16.mxu0 0
      %1009 = vmatmul.mubr.bf16.gmra.mrb[0].mxu0 %v798
      %v1010 = vpop.f32.mrb[0].mxu0
      %v1011 = vadd.f32 0.0, %v1010
      %v1012 = vpop.f32.mrb[0].mxu0
      %v1013 = vpop.f32.mrb[0].mxu0
      %v1014 = vadd.f32 0.0, %v1013
      %v1015 = vpop.f32.mrb[0].mxu0
      %1016 = vmatprep.mubr.bf16.mxu0 0
      %1017 = vmatmul.mubr.bf16.gmra.mrb[0].mxu0 %v799
      %v1018 = vpop.f32.mrb[0].mxu0
      %v1019 = vadd.f32 0.0, %v1018
      %v1020 = vpop.f32.mrb[0].mxu0
      %v1021 = vpop.f32.mrb[0].mxu0
      %v1022 = vadd.f32 0.0, %v1021
      %v1023 = vpop.f32.mrb[0].mxu0
      %1024 = vdwg.mxu0
      %v1025 = vpack.c.bf16 %v902, %v899
      %v1026 = vpack.c.bf16 %v910, %v907
      %v1027 = vpack.c.bf16 %v918, %v915
      %v1028 = vpack.c.bf16 %v926, %v923
      %v1029 = vpack.c.bf16 %v934, %v931
      %v1030 = vpack.c.bf16 %v942, %v939
      %v1031 = vpack.c.bf16 %v950, %v947
      %v1032 = vpack.c.bf16 %v958, %v955
      %v1033 = vpack.c.bf16 %v966, %v963
      %v1034 = vpack.c.bf16 %v974, %v971
      %v1035 = vpack.c.bf16 %v982, %v979
      %v1036 = vpack.c.bf16 %v990, %v987
      %v1037 = vpack.c.bf16 %v998, %v995
      %v1038 = vpack.c.bf16 %v1006, %v1003
      %v1039 = vpack.c.bf16 %v1014, %v1011
      %v1040 = vpack.c.bf16 %v1022, %v1019
      %v1057 = vunpack.c.l.b16 %v1025
      %v1058 = vunpack.c.h.b16 %v1025
      %v1059 = vunpack.c.l.b16 %v1026
      %v1060 = vunpack.c.h.b16 %v1026
      %v1061 = vunpack.c.l.b16 %v1027
      %v1062 = vunpack.c.h.b16 %v1027
      %v1063 = vunpack.c.l.b16 %v1028
      %v1064 = vunpack.c.h.b16 %v1028
      %v1065 = vunpack.c.l.b16 %v1029
      %v1066 = vunpack.c.h.b16 %v1029
      %v1067 = vunpack.c.l.b16 %v1030
      %v1068 = vunpack.c.h.b16 %v1030
      %v1069 = vunpack.c.l.b16 %v1031
      %v1070 = vunpack.c.h.b16 %v1031
      %v1071 = vunpack.c.l.b16 %v1032
      %v1072 = vunpack.c.h.b16 %v1032
      %v1073 = vunpack.c.l.b16 %v1033
      %v1074 = vunpack.c.h.b16 %v1033
      %v1075 = vunpack.c.l.b16 %v1034
      %v1076 = vunpack.c.h.b16 %v1034
      %v1077 = vunpack.c.l.b16 %v1035
      %v1078 = vunpack.c.h.b16 %v1035
      %v1079 = vunpack.c.l.b16 %v1036
      %v1080 = vunpack.c.h.b16 %v1036
      %v1081 = vunpack.c.l.b16 %v1037
      %v1082 = vunpack.c.h.b16 %v1037
      %v1083 = vunpack.c.l.b16 %v1038
      %v1084 = vunpack.c.h.b16 %v1038
      %v1085 = vunpack.c.l.b16 %v1039
      %v1086 = vunpack.c.h.b16 %v1039
      %v1087 = vunpack.c.l.b16 %v1040
      %v1088 = vunpack.c.h.b16 %v1040
      %v1089 = vpack.c.b16 %v1057, %v1057
      %v1090 = vpack.c.b16 %v1058, %v1058
      %v1091 = vpack.c.b16 %v1059, %v1059
      %v1092 = vpack.c.b16 %v1060, %v1060
      %v1093 = vpack.c.b16 %v1061, %v1061
      %v1094 = vpack.c.b16 %v1062, %v1062
      %v1095 = vpack.c.b16 %v1063, %v1063
      %v1096 = vpack.c.b16 %v1064, %v1064
      %v1097 = vpack.c.b16 %v1065, %v1065
      %v1098 = vpack.c.b16 %v1066, %v1066
      %v1099 = vpack.c.b16 %v1067, %v1067
      %v1100 = vpack.c.b16 %v1068, %v1068
      %v1101 = vpack.c.b16 %v1069, %v1069
      %v1102 = vpack.c.b16 %v1070, %v1070
      %v1103 = vpack.c.b16 %v1071, %v1071
      %v1104 = vpack.c.b16 %v1072, %v1072
      %v1105 = vpack.c.b16 %v1073, %v1073
      %v1106 = vpack.c.b16 %v1074, %v1074
      %v1107 = vpack.c.b16 %v1075, %v1075
      %v1108 = vpack.c.b16 %v1076, %v1076
      %v1109 = vpack.c.b16 %v1077, %v1077
      %v1110 = vpack.c.b16 %v1078, %v1078
      %v1111 = vpack.c.b16 %v1079, %v1079
      %v1112 = vpack.c.b16 %v1080, %v1080
      %v1113 = vpack.c.b16 %v1081, %v1081
      %v1114 = vpack.c.b16 %v1082, %v1082
      %v1115 = vpack.c.b16 %v1083, %v1083
      %v1116 = vpack.c.b16 %v1084, %v1084
      %v1117 = vpack.c.b16 %v1085, %v1085
      %v1118 = vpack.c.b16 %v1086, %v1086
      %v1119 = vpack.c.b16 %v1087, %v1087
      %v1120 = vpack.c.b16 %v1088, %v1088
      %1153 = vst [vmem:[#allocation9] sm:$0xf] %v1089
      %1154 = vst [vmem:[#allocation9 + $0x4] sm:$0xf] %v1090
      %1155 = vst [vmem:[#allocation9 + $0x8] sm:$0xf] %v1091
      %1156 = vst [vmem:[#allocation9 + $0xc] sm:$0xf] %v1092
      %1157 = vst [vmem:[#allocation9 + $0x10] sm:$0xf] %v1093
      %1158 = vst [vmem:[#allocation9 + $0x14] sm:$0xf] %v1094
      %1159 = vst [vmem:[#allocation9 + $0x18] sm:$0xf] %v1095
      %1160 = vst [vmem:[#allocation9 + $0x1c] sm:$0xf] %v1096
      %1161 = vst [vmem:[#allocation9 + $0x20] sm:$0xf] %v1097
      %1162 = vst [vmem:[#allocation9 + $0x24] sm:$0xf] %v1098
      %1163 = vst [vmem:[#allocation9 + $0x28] sm:$0xf] %v1099
      %1164 = vst [vmem:[#allocation9 + $0x2c] sm:$0xf] %v1100
      %1165 = vst [vmem:[#allocation9 + $0x30] sm:$0xf] %v1101
      %1166 = vst [vmem:[#allocation9 + $0x34] sm:$0xf] %v1102
      %1167 = vst [vmem:[#allocation9 + $0x38] sm:$0xf] %v1103
      %1168 = vst [vmem:[#allocation9 + $0x3c] sm:$0xf] %v1104
      %1169 = vst [vmem:[#allocation9 + $0x40] sm:$0xf] %v1105
      %1170 = vst [vmem:[#allocation9 + $0x44] sm:$0xf] %v1106
      %1171 = vst [vmem:[#allocation9 + $0x48] sm:$0xf] %v1107
      %1172 = vst [vmem:[#allocation9 + $0x4c] sm:$0xf] %v1108
      %1173 = vst [vmem:[#allocation9 + $0x50] sm:$0xf] %v1109
      %1174 = vst [vmem:[#allocation9 + $0x54] sm:$0xf] %v1110
      %1175 = vst [vmem:[#allocation9 + $0x58] sm:$0xf] %v1111
      %1176 = vst [vmem:[#allocation9 + $0x5c] sm:$0xf] %v1112
      %1177 = vst [vmem:[#allocation9 + $0x60] sm:$0xf] %v1113
      %1178 = vst [vmem:[#allocation9 + $0x64] sm:$0xf] %v1114
      %1179 = vst [vmem:[#allocation9 + $0x68] sm:$0xf] %v1115
      %1180 = vst [vmem:[#allocation9 + $0x6c] sm:$0xf] %v1116
      %1181 = vst [vmem:[#allocation9 + $0x70] sm:$0xf] %v1117
      %1182 = vst [vmem:[#allocation9 + $0x74] sm:$0xf] %v1118
      %1183 = vst [vmem:[#allocation9 + $0x78] sm:$0xf] %v1119
      %1184 = vst [vmem:[#allocation9 + $0x7c] sm:$0xf] %v1120
    $region37: #{tpu_custom_call.1} parent=1 // pred_fallthru
      _
    // Predicated region
    $region38: #{tpu_custom_call.1} parent=1 // pred_check
      _
    $region39: #{tpu_custom_call.1} parent=1 // pred_check_branch
      %1186 = sbr.rel (0) target = $region41
    $region40: #{tpu_custom_call.1} parent=1 // pred_region
      %s1188 = ssub.s32 2048, 2048
      %1189 = vsyncadd [#allocation5], %s1188
      %s1190 = sshll.u32 [#allocation9], 4
      %s1191 = int_to_ptr.vmem [resolvable:$true] %s1190
      %1196 = dma.vmem_to_hbm [thread:$0]  %s1191, 2048, %s4, [#allocation5], 64, 64, 4
    $region41: #{tpu_custom_call.1} parent=1 // pred_fallthru
      _
    // Predicated region
    $region42: #{tpu_custom_call.1} parent=1 // pred_check
      _
    $region43: #{tpu_custom_call.1} parent=1 // pred_check_branch
      %1198 = sbr.rel (0) target = $region45
    $region44: #{tpu_custom_call.1} parent=1 // pred_region
      %1199 = dma.done [#allocation5], 2048
    $region45: #{tpu_custom_call.1} parent=1 // pred_fallthru
      _
    %1200 = vsyncpa [#allocation4], 1
    %1201 = vsyncpa [#allocation7], 1
    %1202 = vsyncpa [#allocation5], 1

</llo_original>
